<compile_context>
chip_gen: v6e
topology: v6e:2x2x1
jax: 0.10.0
libtpu: 0.0.40
codegen_flags: <defaults>
</compile_context>

<pallas_src>
import functools

import jax
import jax.numpy as jnp
from jax.experimental import pallas as pl
from jax.experimental.pallas import tpu as pltpu


# ----------------------------------------------------------------------------
# small helpers
# ----------------------------------------------------------------------------
def _round_up(x, m):
    return (x + m - 1) // m * m


def _pad_n(n):
    # Output-channel padding policy: large layers pad to multiples of 256 so the
    # GEMM can use tn=256 tiles (full occupancy of the 256-wide MXU on v6e/v7x);
    # small layers stay at 128 to bound activation writeback waste (v5e-friendly).
    if n >= 256:
        return _round_up(n, 256)
    return 128


def adopt_weight(weight, global_step, threshold=0, value=0.0):
    if global_step < threshold:
        weight = value
    return weight


# ----------------------------------------------------------------------------
# Pallas kernels
# ----------------------------------------------------------------------------
def _gemm_kernel(a_ref, w_ref, b_ref, o_ref, acc_ref, *, act):
    """K-tiled GEMM, f32 VMEM accumulation, fused bias + activation, bf16/f32 out."""
    @pl.when(pl.program_id(2) == 0)
    def _():
        acc_ref[...] = jnp.zeros_like(acc_ref)

    acc_ref[...] += jnp.dot(a_ref[...], w_ref[...],
                            preferred_element_type=jnp.float32)

    @pl.when(pl.program_id(2) == pl.num_programs(2) - 1)
    def _():
        y = acc_ref[...] + b_ref[0:1, :]
        if act == "leaky_relu":
            y = jnp.where(y >= 0, y, 0.2 * y)
        o_ref[...] = y.astype(o_ref.dtype)


def _gemm_bn_kernel(a_ref, w_ref, b_ref, o_ref, s_ref, q_ref, acc_ref, *, m_true):
    """GEMM with BatchNorm column statistics fused into the epilogue.

    grid = (j, i, k): j over N tiles (outer), i over M tiles, k over K tiles.
    s_ref / q_ref are (8, tn) per-column partial sum / sum-of-squares accumulated
    across all i blocks (rows >= m_true are masked out).
    """
    j = pl.program_id(0)
    i = pl.program_id(1)
    k = pl.program_id(2)
    del j

    @pl.when(k == 0)
    def _():
        acc_ref[...] = jnp.zeros_like(acc_ref)

    @pl.when(jnp.logical_and(i == 0, k == 0))
    def _():
        s_ref[...] = jnp.zeros_like(s_ref)
        q_ref[...] = jnp.zeros_like(q_ref)

    acc_ref[...] += jnp.dot(a_ref[...], w_ref[...],
                            preferred_element_type=jnp.float32)

    @pl.when(k == pl.num_programs(2) - 1)
    def _():
        y = acc_ref[...] + b_ref[0:1, :]
        o_ref[...] = y.astype(o_ref.dtype)
        tm, tn = y.shape
        row = i * tm + jax.lax.broadcasted_iota(jnp.int32, y.shape, 0)
        ym = jnp.where(row < m_true, y, 0.0)
        s_ref[...] += ym.reshape(tm // 8, 8, tn).sum(axis=0)
        q_ref[...] += (ym * ym).reshape(tm // 8, 8, tn).sum(axis=0)


def _bn_act_kernel(y_ref, sc_ref, sh_ref, o_ref):
    """Fused BatchNorm affine + LeakyReLU(0.2), bf16 in / bf16 out, f32 compute."""
    y = y_ref[...].astype(jnp.float32)
    y = y * sc_ref[0:1, :] + sh_ref[0:1, :]
    y = jnp.where(y >= 0, y, 0.2 * y)
    o_ref[...] = y.astype(o_ref.dtype)


def _disc_final_kernel(a_ref, w_ref, b_ref, o_ref, acc_ref, *, m_true, kind):
    """Final 1-channel PatchGAN conv fused with the logits reduction.

    kind: "mean" -> sum(logits); "hinge_real" -> sum(relu(1 - logits));
          "hinge_fake" -> sum(relu(1 + logits)).  Caller divides by m_true.
    """
    i = pl.program_id(0)
    k = pl.program_id(1)

    @pl.when(jnp.logical_and(i == 0, k == 0))
    def _():
        o_ref[...] = jnp.zeros_like(o_ref)

    @pl.when(k == 0)
    def _():
        acc_ref[...] = jnp.zeros_like(acc_ref)

    acc_ref[...] += jnp.dot(a_ref[...], w_ref[...],
                            preferred_element_type=jnp.float32)

    @pl.when(k == pl.num_programs(1) - 1)
    def _():
        s = acc_ref[...] + b_ref[0:1, :]
        if kind == "mean":
            v = s
        elif kind == "hinge_real":
            v = jnp.maximum(1.0 - s, 0.0)
        else:  # "hinge_fake"
            v = jnp.maximum(1.0 + s, 0.0)
        tm, lanes = v.shape
        row = i * tm + jax.lax.broadcasted_iota(jnp.int32, v.shape, 0)
        col = jax.lax.broadcasted_iota(jnp.int32, v.shape, 1)
        v = jnp.where(jnp.logical_and(row < m_true, col == 0), v, 0.0)
        o_ref[...] += v.reshape(tm // 8, 8, lanes).sum(axis=0)


def _mse_kernel(a_ref, b_ref, o_ref, *, rows_true):
    """Lane-dense sum of squared differences into a resident (8,128) accumulator."""
    @pl.when(pl.program_id(0) == 0)
    def _():
        o_ref[...] = jnp.zeros_like(o_ref)
    d = a_ref[...] - b_ref[...]
    tr = d.shape[0]
    row = pl.program_id(0) * tr + jax.lax.broadcasted_iota(jnp.int32, d.shape, 0)
    d = jnp.where(row < rows_true, d, 0.0)
    o_ref[...] += (d * d).reshape(tr // 8, 8, 128).sum(axis=0)


def _flow_kernel(xt_ref, tf_ref, vt_ref,
                 w_in_ref, b_in_ref, w_t_ref, b_t_ref,
                 bw_ref, bb_ref, w_out_ref, b_out_ref,
                 o_ref, h_ref, *, m_true, depth):
    """Flow-matching MLP + MSE.  grid = (m_blocks, depth); the hidden state is a
    VMEM scratch carried across the depth axis; one residual block weight slice
    is streamed per grid step."""
    i = pl.program_id(0)
    d = pl.program_id(1)

    @pl.when(jnp.logical_and(i == 0, d == 0))
    def _():
        o_ref[...] = jnp.zeros_like(o_ref)

    @pl.when(d == 0)
    def _():
        h_ref[...] = (
            jnp.dot(xt_ref[...], w_in_ref[...], preferred_element_type=jnp.float32)
            + b_in_ref[0:1, :]
            + jnp.dot(tf_ref[...], w_t_ref[...], preferred_element_type=jnp.float32)
            + b_t_ref[0:1, :])

    h = h_ref[...]
    u = (jnp.dot(h.astype(jnp.bfloat16), bw_ref[0],
                 preferred_element_type=jnp.float32) + bb_ref[0, 0:1, :])
    h = h + u * jax.nn.sigmoid(u)            # residual SiLU block
    h_ref[...] = h

    @pl.when(d == depth - 1)
    def _():
        v = (jnp.dot(h.astype(jnp.bfloat16), w_out_ref[...],
                     preferred_element_type=jnp.float32) + b_out_ref[0:1, :])
        diff = v - vt_ref[...]
        tm = diff.shape[0]
        row = i * tm + jax.lax.broadcasted_iota(jnp.int32, diff.shape, 0)
        diff = jnp.where(row < m_true, diff, 0.0)
        o_ref[...] += diff * diff


# ----------------------------------------------------------------------------
# Pallas wrappers
# ----------------------------------------------------------------------------
def _pick_tk(K):
    for cand in (512, 256, 128):
        if K % cand == 0:
            return cand
    return K                                  # small K: single full-dim block


def pallas_gemm(a, wd, *, act="none", out_dtype=jnp.bfloat16):
    """(M, K) @ prepped (K, Np) + bias, fused activation.  Ragged M -> partial block."""
    M, K = a.shape
    assert K == wd["k"], (K, wd["k"])
    Np = wd["np"]
    a = a.astype(wd["w"].dtype)
    tm = min(512, _round_up(max(M, 8), 8))
    tn = 256 if Np % 256 == 0 else 128
    tk = _pick_tk(K)
    return pl.pallas_call(
        functools.partial(_gemm_kernel, act=act),
        out_shape=jax.ShapeDtypeStruct((M, Np), out_dtype),
        grid=(pl.cdiv(M, tm), Np // tn, K // tk),
        in_specs=[pl.BlockSpec((tm, tk), lambda i, j, k: (i, k)),
                  pl.BlockSpec((tk, tn), lambda i, j, k: (k, j)),
                  pl.BlockSpec((8, tn), lambda i, j, k: (0, j))],
        out_specs=pl.BlockSpec((tm, tn), lambda i, j, k: (i, j)),
        scratch_shapes=[pltpu.VMEM((tm, tn), jnp.float32)],
        compiler_params=pltpu.CompilerParams(
            dimension_semantics=("parallel", "parallel", "arbitrary")),
    )(a, wd["w"], wd["b"])


def pallas_gemm_bn(a, wd):
    """GEMM with BN column statistics fused into the epilogue.  Returns (y, s, q)."""
    M, K = a.shape
    assert K == wd["k"], (K, wd["k"])
    Np = wd["np"]
    a = a.astype(wd["w"].dtype)
    tm = min(512, _round_up(max(M, 8), 8))
    tn = 256 if Np % 256 == 0 else 128
    tk = _pick_tk(K)
    return pl.pallas_call(
        functools.partial(_gemm_bn_kernel, m_true=M),
        out_shape=(jax.ShapeDtypeStruct((M, Np), jnp.bfloat16),
                   jax.ShapeDtypeStruct((8, Np), jnp.float32),
                   jax.ShapeDtypeStruct((8, Np), jnp.float32)),
        grid=(Np // tn, pl.cdiv(M, tm), K // tk),
        in_specs=[pl.BlockSpec((tm, tk), lambda j, i, k: (i, k)),
                  pl.BlockSpec((tk, tn), lambda j, i, k: (k, j)),
                  pl.BlockSpec((8, tn), lambda j, i, k: (0, j))],
        out_specs=(pl.BlockSpec((tm, tn), lambda j, i, k: (i, j)),
                   pl.BlockSpec((8, tn), lambda j, i, k: (0, j)),
                   pl.BlockSpec((8, tn), lambda j, i, k: (0, j))),
        scratch_shapes=[pltpu.VMEM((tm, tn), jnp.float32)],
        compiler_params=pltpu.CompilerParams(
            dimension_semantics=("parallel", "arbitrary", "arbitrary")),
    )(a, wd["w"], wd["b"])


def _bn_scale_shift(s, q, m, gamma, beta, eps=1e-5):
    # One-pass E[x^2]-E[x]^2 in f32 (variance clamped at 0); adequate at the
    # activation magnitudes of a PatchGAN.  Padded channels have gamma==0 so
    # they stay exactly zero through the affine.
    s0 = jnp.sum(s, axis=0)
    q0 = jnp.sum(q, axis=0)
    mean = s0 / m
    var = jnp.maximum(q0 / m - mean * mean, 0.0)
    inv = jax.lax.rsqrt(var + eps)
    scale = gamma * inv
    shift = beta - mean * scale
    npad = s.shape[1]
    return (jnp.broadcast_to(scale[None, :], (8, npad)),
            jnp.broadcast_to(shift[None, :], (8, npad)))


def pallas_bn_act(y, scale, shift):
    M, Np = y.shape
    tr = min(512, _round_up(max(M, 8), 8))
    return pl.pallas_call(
        _bn_act_kernel,
        out_shape=jax.ShapeDtypeStruct((M, Np), jnp.bfloat16),
        grid=(pl.cdiv(M, tr),),
        in_specs=[pl.BlockSpec((tr, Np), lambda i: (i, 0)),
                  pl.BlockSpec((8, Np), lambda i: (0, 0)),
                  pl.BlockSpec((8, Np), lambda i: (0, 0))],
        out_specs=pl.BlockSpec((tr, Np), lambda i: (i, 0)),
        compiler_params=pltpu.CompilerParams(dimension_semantics=("parallel",)),
    )(y, scale, shift)


def pallas_disc_final_mean(a, wd, kind):
    """Final 1-channel conv fused with mean / hinge reduction over the logits."""
    M, K = a.shape
    assert K == wd["k"] and wd["np"] == 128
    a = a.astype(jnp.bfloat16)
    tm = min(256, _round_up(max(M, 8), 8))
    tk = _pick_tk(K)
    out = pl.pallas_call(
        functools.partial(_disc_final_kernel, m_true=M, kind=kind),
        out_shape=jax.ShapeDtypeStruct((8, 128), jnp.float32),
        grid=(pl.cdiv(M, tm), K // tk),
        in_specs=[pl.BlockSpec((tm, tk), lambda i, k: (i, k)),
                  pl.BlockSpec((tk, 128), lambda i, k: (k, 0)),
                  pl.BlockSpec((8, 128), lambda i, k: (0, 0))],
        out_specs=pl.BlockSpec((8, 128), lambda i, k: (0, 0)),
        scratch_shapes=[pltpu.VMEM((tm, 128), jnp.float32)],
        compiler_params=pltpu.CompilerParams(
            dimension_semantics=("arbitrary", "arbitrary")),
    )(a, wd["w"], wd["b"])
    return jnp.sum(out) / M


def pallas_mse(a, b):
    """mean((a-b)**2) over all elements (== F.mse_loss), f32 accumulation."""
    fa = a.reshape(-1).astype(jnp.float32)
    fb = b.reshape(-1).astype(jnp.float32)
    n = fa.shape[0]
    if n % 128 != 0:                       # rare fallback: tiny tail pad (zeros diff to 0)
        npad = _round_up(n, 128)
        fa = jnp.pad(fa, (0, npad - n))
        fb = jnp.pad(fb, (0, npad - n))
    rows = fa.shape[0] // 128
    A = fa.reshape(rows, 128)
    B = fb.reshape(rows, 128)
    tr = min(2048, _round_up(rows, 8))
    out = pl.pallas_call(
        functools.partial(_mse_kernel, rows_true=rows),
        out_shape=jax.ShapeDtypeStruct((8, 128), jnp.float32),
        grid=(pl.cdiv(rows, tr),),
        in_specs=[pl.BlockSpec((tr, 128), lambda i: (i, 0)),
                  pl.BlockSpec((tr, 128), lambda i: (i, 0))],
        out_specs=pl.BlockSpec((8, 128), lambda i: (0, 0)),
        compiler_params=pltpu.CompilerParams(dimension_semantics=("arbitrary",)),
    )(A, B)
    return jnp.sum(out) / n


# ----------------------------------------------------------------------------
# discriminator (im2col in the persistent NHWC layout + Pallas GEMMs)
# ----------------------------------------------------------------------------
def discriminator_logits_mean(layers, x_nchw, kind):
    """Run the PatchGAN and return mean(fn(logits)); fn selected by `kind`.

    Intermediate activations stay in a lane-dense NHWC-flat bf16 layout (padded
    channels are exactly zero), and the final 1-channel conv is fused with the
    reduction so the logits tensor never touches HBM.
    """
    act = x_nchw.astype(jnp.bfloat16)
    layout = "NCHW"                        # only the raw image starts as NCHW
    for layer in layers[:-1]:
        stride = layer["stride"]
        patches = jax.lax.conv_general_dilated_patches(
            act, (4, 4), (stride, stride), padding=[(1, 1), (1, 1)],
            dimension_numbers=(layout, "HWIO", "NHWC"))
        Nb, Ho, Wo, CK = patches.shape     # feature dim ordered (channel, kh, kw)
        a = patches.reshape(Nb * Ho * Wo, CK)
        M = Nb * Ho * Wo
        assert CK == layer["wd"]["k"], (CK, layer["wd"]["k"])
        if layer["bn"]:
            y, ssum, qsum = pallas_gemm_bn(a, layer["wd"])
            scale, shift = _bn_scale_shift(ssum, qsum, M,
                                           layer["gamma"], layer["beta"])
            y = pallas_bn_act(y, scale, shift)
        else:
            y = pallas_gemm(a, layer["wd"], act="leaky_relu",
                            out_dtype=jnp.bfloat16)
        act = y.reshape(Nb, Ho, Wo, layer["wd"]["np"])
        layout = "NHWC"

    final = layers[-1]
    stride = final["stride"]
    patches = jax.lax.conv_general_dilated_patches(
        act, (4, 4), (stride, stride), padding=[(1, 1), (1, 1)],
        dimension_numbers=(layout, "HWIO", "NHWC"))
    Nb, Ho, Wo, CK = patches.shape
    a = patches.reshape(Nb * Ho * Wo, CK)
    assert CK == final["wd"]["k"], (CK, final["wd"]["k"])
    return pallas_disc_final_mean(a, final["wd"], kind)


# ----------------------------------------------------------------------------
# flow loss (rectified-flow MLP, fused MLP + MSE kernel)
# ----------------------------------------------------------------------------
def flow_loss_fn(fp, z, rng, flow_mul):
    # TODO(synk): exact FlowLoss (SimpleMLPAdaLN) source not provided; standard
    # rectified flow-matching MSE with a residual-SiLU velocity MLP is used.
    B, L, C = z.shape
    assert C == fp["C"]
    x1 = jnp.tile(z.reshape(B * L, C), (flow_mul, 1))
    M = x1.shape[0]
    k1, k2 = jax.random.split(rng)
    noise = jax.random.normal(k1, (M, C), jnp.float32)
    t = jax.random.uniform(k2, (M, 1), jnp.float32)
    x_t = t * x1 + (1.0 - t) * noise
    v_target = x1 - noise
    ang = t * fp["t_freqs"][None, :]
    t_feat = jnp.concatenate([jnp.sin(ang), jnp.cos(ang)], axis=-1)

    Wp, D, F2 = fp["Wp"], fp["depth"], fp["F2"]
    tm = min(128, _round_up(max(M, 8), 8))   # small tm bounds vreg pressure of the
                                             # resident (tm, Wp) hidden state

    out = pl.pallas_call(
        functools.partial(_flow_kernel, m_true=M, depth=D),
        out_shape=jax.ShapeDtypeStruct((tm, C), jnp.float32),
        grid=(pl.cdiv(M, tm), D),
        in_specs=[
            pl.BlockSpec((tm, C), lambda i, d: (i, 0)),        # x_t
            pl.BlockSpec((tm, F2), lambda i, d: (i, 0)),       # t embedding
            pl.BlockSpec((tm, C), lambda i, d: (i, 0)),        # v_target
            pl.BlockSpec((C, Wp), lambda i, d: (0, 0)),        # w_in (resident)
            pl.BlockSpec((8, Wp), lambda i, d: (0, 0)),        # b_in
            pl.BlockSpec((F2, Wp), lambda i, d: (0, 0)),       # w_t
            pl.BlockSpec((8, Wp), lambda i, d: (0, 0)),        # b_t
            pl.BlockSpec((1, Wp, Wp), lambda i, d: (d, 0, 0)),  # block weight (streamed)
            pl.BlockSpec((1, 8, Wp), lambda i, d: (d, 0, 0)),   # block bias
            pl.BlockSpec((Wp, C), lambda i, d: (0, 0)),        # w_out
            pl.BlockSpec((8, C), lambda i, d: (0, 0)),         # b_out
        ],
        out_specs=pl.BlockSpec((tm, C), lambda i, d: (0, 0)),
        scratch_shapes=[pltpu.VMEM((tm, Wp), jnp.float32)],
        compiler_params=pltpu.CompilerParams(
            dimension_semantics=("arbitrary", "arbitrary")),
    )(x_t, t_feat, v_target,
      fp["w_in"], fp["b_in"], fp["w_t"], fp["b_t"],
      fp["blocks_w"], fp["blocks_b"], fp["w_out"], fp["b_out"])
    return jnp.sum(out) / (M * C)


def flow_target_proj_apply(params, info):
    if params["w_proj"] is None:
        return info                                   # nn.Identity
    wd = params["w_proj"]
    B, L, C = info.shape
    a = info.reshape(B * L, C)
    if C < wd["k"]:                                   # tiny K pad to the 8-row tile
        a = jnp.pad(a, ((0, 0), (0, wd["k"] - C)))
    y = pallas_gemm(a, wd, act="none", out_dtype=jnp.float32)
    return y[:, :wd["n"]].reshape(B, L, wd["n"])


# ----------------------------------------------------------------------------
# parameter init (deterministic, synthetic; weights pre-padded / pre-laid-out once)
# ----------------------------------------------------------------------------
def init_params(key, cfg):
    ks = jax.random.split(key, 64)
    ki = iter(ks)

    def nrm(shape, scale=0.02):
        return scale * jax.random.normal(next(ki), shape, jnp.float32)

    def prep_conv(w, b, c_in_pad):
        # w: (out_c, in_c, 4, 4).  K spans the *padded* input channels so the
        # im2col of the persistent NHWC activation feeds the GEMM directly.
        out_c, in_c, kh, kw = w.shape
        K = c_in_pad * kh * kw
        Np = _pad_n(out_c)
        wk = jnp.zeros((c_in_pad, kh, kw, out_c), jnp.float32)
        wk = wk.at[:in_c].set(jnp.transpose(w, (1, 2, 3, 0)))
        wp = jnp.zeros((K, Np), jnp.bfloat16).at[:, :out_c].set(
            wk.reshape(K, out_c).astype(jnp.bfloat16))
        bp = jnp.zeros((8, Np), jnp.float32).at[:, :out_c].set(
            jnp.broadcast_to(b.astype(jnp.float32), (8, out_c)))
        return dict(w=wp, b=bp, k=K, n=out_c, np=Np)

    def conv_layer(out_c, in_c, c_in_pad, stride, bn, act):
        w = nrm((out_c, in_c, 4, 4))
        b = jnp.zeros((out_c,), jnp.float32)
        wd = prep_conv(w, b, c_in_pad)
        layer = dict(wd=wd, stride=stride, bn=bn, act=act, gamma=None, beta=None)
        if bn:
            Np = wd["np"]
            layer["gamma"] = jnp.zeros((Np,), jnp.float32).at[:out_c].set(1.0)
            layer["beta"] = jnp.zeros((Np,), jnp.float32)
        return layer

    # --- standard pix2pix PatchGAN (Conv k4 [+BatchNorm] + LeakyReLU(0.2)) ---
    # TODO(synk): exact PatchGANDiscriminator weights not provided; synthetic
    # weights; BatchNorm uses batch statistics.
    nl, ndf, in_ch = cfg["disc_num_layers"], cfg["disc_dim"], cfg["disc_in_channels"]
    layers = [conv_layer(ndf, in_ch, in_ch, 2, False, True)]
    c_in_pad = layers[-1]["wd"]["np"]
    nf_prev, nf = 1, 1
    for n in range(1, nl):
        nf = min(2 ** n, 8)
        layers.append(conv_layer(ndf * nf, ndf * nf_prev, c_in_pad, 2, True, True))
        c_in_pad = layers[-1]["wd"]["np"]
        nf_prev = nf
    nf = min(2 ** nl, 8)
    layers.append(conv_layer(ndf * nf, ndf * nf_prev, c_in_pad, 1, True, True))
    c_in_pad = layers[-1]["wd"]["np"]
    layers.append(conv_layer(1, ndf * nf, c_in_pad, 1, False, False))

    def prep_linear(w, b=None):
        Kt, N = w.shape
        Kp = _round_up(max(Kt, 8), 8)
        Np = _pad_n(N)
        wp = jnp.zeros((Kp, Np), jnp.float32).at[:Kt, :N].set(w.astype(jnp.float32))
        bp = jnp.zeros((8, Np), jnp.float32)
        if b is not None:
            bp = bp.at[:, :N].set(jnp.broadcast_to(b.astype(jnp.float32), (8, N)))
        return dict(w=wp, b=bp, k=Kp, k_true=Kt, n=N, np=Np)

    w_proj = (prep_linear(nrm((cfg["codebook_embed_dim"],
                               cfg["flow_target_channels"])))
              if cfg["flow_target_proj"] else None)

    # --- flow-matching MLP weights ---
    C, W, D = cfg["flow_target_channels"], cfg["flow_width"], cfg["flow_depth"]
    Fq = 8
    Wp = _round_up(max(W, 128), 128)

    def pad2(w, rows, cols, dtype):
        r, c = w.shape
        return jnp.zeros((rows, cols), dtype).at[:r, :c].set(w.astype(dtype))

    flow = dict(
        t_freqs=jnp.exp(jnp.linspace(0.0, 4.0, Fq)).astype(jnp.float32),
        w_in=pad2(nrm((C, W)), C, Wp, jnp.float32),
        b_in=jnp.zeros((8, Wp), jnp.float32),
        w_t=pad2(nrm((2 * Fq, W)), 2 * Fq, Wp, jnp.float32),
        b_t=jnp.zeros((8, Wp), jnp.float32),
        blocks_w=jnp.stack([pad2(nrm((W, W)), Wp, Wp, jnp.bfloat16)
                            for _ in range(D)]),
        blocks_b=jnp.zeros((D, 8, Wp), jnp.float32),
        w_out=pad2(nrm((W, C)), Wp, C, jnp.bfloat16),
        b_out=jnp.zeros((8, C), jnp.float32),
        Wp=Wp, depth=D, C=C, F2=2 * Fq,
    )
    return dict(disc=layers, w_proj=w_proj, flow=flow)


# ----------------------------------------------------------------------------
# VQFlowLoss.forward
# ----------------------------------------------------------------------------
def vq_flow_loss_forward(params, cfg, codebook_loss, inputs, reconstructions,
                         optimizer_idx, global_step, info, rng):
    # info is NCHW latents -> (B, H*W, C), matching the PyTorch view/permute.
    if info.ndim == 4:
        B, C, H, W = info.shape
        info = info.reshape(B, C, H * W).transpose(0, 2, 1)
    assert info.ndim == 3

    proj_info = flow_target_proj_apply(params, info)

    if optimizer_idx == 0:
        rec_loss = pallas_mse(inputs, reconstructions)              # F.mse_loss
        # TODO(synk): LPIPS perceptual loss needs pretrained VGG weights; contributes 0.0.
        p_loss = jnp.float32(0.0)
        if cfg["perceptual_warmup"] is None:
            perceptual_weight = cfg["perceptual_weight"]
        else:
            perceptual_weight = (min(1.0, global_step / cfg["perceptual_warmup"])
                                 * cfg["perceptual_weight"])

        mean_logits_fake = discriminator_logits_mean(
            params["disc"], reconstructions, "mean")
        generator_adv_loss = -mean_logits_fake                      # hinge_gen_loss

        # TODO(synk): adaptive disc/flow weights need autograd on last-layer grads;
        # defaults (disc_adaptive_weight=False, flow_adaptive_weight=False) -> 1.
        disc_adaptive_weight = 1.0
        flow_adaptive_weight = 1.0
        disc_weight = adopt_weight(cfg["disc_weight"], global_step, cfg["disc_start"])

        flow_loss = flow_loss_fn(params["flow"], proj_info, rng, cfg["flow_mul"])
        flow_weight = adopt_weight(cfg["flow_loss_weight"], global_step,
                                   cfg["flow_start"])
        if global_step < cfg["flow_warmup"]:
            flow_weight = (min(1.0, global_step / cfg["flow_warmup"])
                           * cfg["flow_loss_weight"])

        loss = (cfg["rec_weight"] * rec_loss
                + perceptual_weight * p_loss
                + disc_adaptive_weight * disc_weight * generator_adv_loss
                + flow_adaptive_weight * flow_weight * flow_loss
                + codebook_loss[0] + codebook_loss[1] + codebook_loss[2])
        if cfg["std_loss_weight"] > 0:
            loss = loss + cfg["std_loss_weight"] * (jnp.std(info, ddof=1) - 1.0) ** 2
        if len(codebook_loss) > 4:
            loss = loss + codebook_loss[4]
        # latent_norm = ||info||_2 row-mean is a logging-only quantity in the
        # reference; it is not part of the returned loss (would be DCE'd here).
        return loss

    elif optimizer_idx == 1:
        # hinge_d_loss, with the relu/mean reduction fused into the final conv.
        loss_real = discriminator_logits_mean(params["disc"], inputs, "hinge_real")
        loss_fake = discriminator_logits_mean(params["disc"], reconstructions,
                                              "hinge_fake")
        disc_weight = adopt_weight(cfg["disc_weight"], global_step, cfg["disc_start"])
        d_adversarial_loss = disc_weight * 0.5 * (loss_real + loss_fake)
        # TODO(synk): LeCAM EMA (host-side .item() state), DiffAugment and the CR
        # branch are off by default and not implemented.
        if cfg["flow_loss_trainable"]:
            flow_loss = flow_loss_fn(params["flow"], proj_info, rng, cfg["flow_mul"])
        else:
            flow_loss = jnp.float32(0.0)
        return d_adversarial_loss + flow_loss

    raise ValueError("optimizer_idx must be 0 or 1")


# ----------------------------------------------------------------------------
# demo
# ----------------------------------------------------------------------------
if __name__ == "__main__":
    cfg = dict(
        disc_start=0, disc_weight=1.0, disc_dim=8, disc_num_layers=2,
        disc_in_channels=3,
        rec_weight=1.0, perceptual_weight=1.0, perceptual_warmup=None,
        codebook_embed_dim=4, flow_target_channels=8, flow_depth=2, flow_width=64,
        flow_mul=2, flow_loss_weight=0.1, flow_start=0, flow_warmup=0,
        flow_target_proj=True, flow_loss_trainable=True, std_loss_weight=0.0,
    )

    key = jax.random.PRNGKey(0)
    k_in, k_rec, k_info, k_par, k_flow = jax.random.split(key, 5)

    inputs = jax.random.normal(k_in, (2, 3, 16, 16), jnp.float32)            # NCHW
    reconstructions = jax.random.normal(k_rec, (2, 3, 16, 16), jnp.float32)  # NCHW
    info = jax.random.normal(k_info, (2, 4, 8, 8), jnp.float32)              # NCHW latents
    codebook_loss = (jnp.float32(0.10), jnp.float32(0.05),
                     jnp.float32(0.02), jnp.float32(0.90))  # vq, commit, entropy, usage

    params = init_params(k_par, cfg)

    g_loss = vq_flow_loss_forward(params, cfg, codebook_loss, inputs,
                                  reconstructions, optimizer_idx=0,
                                  global_step=100, info=info, rng=k_flow)
    d_loss = vq_flow_loss_forward(params, cfg, codebook_loss, inputs,
                                  reconstructions, optimizer_idx=1,
                                  global_step=100, info=info, rng=k_flow)
    jax.block_until_ready((g_loss, d_loss))
    assert bool(jnp.isfinite(g_loss)) and bool(jnp.isfinite(d_loss))
    print("KERNEL_OK")
</pallas_src>

<mosaic_0001>
module attributes {stable_mosaic.version = 11 : i64} {
  func.func @_gemm_kernel(%arg0: i32, %arg1: i32, %arg2: i32, %arg3: memref<128x8xf32, #tpu.memory_space<vmem>>, %arg4: memref<8x128xf32, #tpu.memory_space<vmem>>, %arg5: memref<8x128xf32, #tpu.memory_space<vmem>>, %arg6: memref<128x128xf32, #tpu.memory_space<vmem>>, %arg7: memref<128x128xf32, #tpu.memory_space<vmem>>) attributes {dimension_semantics = [#tpu.dimension_semantics<parallel>, #tpu.dimension_semantics<parallel>, #tpu.dimension_semantics<arbitrary>], iteration_bounds = array<i64: 1, 1, 1>, scalar_prefetch = 0 : i64, scratch_operands = 1 : i64, tpu.core_type = #tpu.core_type<tc>, window_params = [{transform_indices = @transform_0, window_bounds = array<i64: 128, 8>}, {transform_indices = @transform_1, window_bounds = array<i64: 8, 128>}, {transform_indices = @transform_2, window_bounds = array<i64: 8, 128>}, {transform_indices = @transform_3, window_bounds = array<i64: 128, 128>}]} {
    %c0_i32 = arith.constant 0 : i32
    %0 = arith.cmpi eq, %arg2, %c0_i32 : i32
    %1 = arith.extui %0 : i1 to i32
    %c0_i32_0 = arith.constant 0 : i32
    %2 = arith.cmpi ne, %1, %c0_i32_0 : i32
    scf.if %2 {
      %cst_10 = arith.constant 0.000000e+00 : f32
      %12 = vector.broadcast %cst_10 : f32 to vector<128x128xf32>
      %c0_11 = arith.constant 0 : index
      %c0_12 = arith.constant 0 : index
      %13 = vector.load %arg7[%c0_11, %c0_12] : memref<128x128xf32, #tpu.memory_space<vmem>>, vector<128x128xf32>
      tpu.vector_store %arg7[%c0_11, %c0_12], %12 {strides = array<i32>} : memref<128x128xf32, #tpu.memory_space<vmem>>, vector<128x128xf32>,
    } else {
    }
    %c0 = arith.constant 0 : index
    %c0_1 = arith.constant 0 : index
    %3 = vector.load %arg7[%c0, %c0_1] : memref<128x128xf32, #tpu.memory_space<vmem>>, vector<128x128xf32>
    %c0_2 = arith.constant 0 : index
    %c0_3 = arith.constant 0 : index
    %4 = vector.load %arg3[%c0_2, %c0_3] : memref<128x8xf32, #tpu.memory_space<vmem>>, vector<128x8xf32>
    %c0_4 = arith.constant 0 : index
    %c0_5 = arith.constant 0 : index
    %5 = vector.load %arg4[%c0_4, %c0_5] : memref<8x128xf32, #tpu.memory_space<vmem>>, vector<8x128xf32>
    %cst = arith.constant dense<0.000000e+00> : vector<128x128xf32>
    %6 = tpu.matmul %4, %5, %cst {dimension_numbers = #tpu.dot_dimension_numbers<[1], [0], [0], [1], [0, 0, 1, 1], [], []>} : vector<128x8xf32>, vector<8x128xf32>, vector<128x128xf32> -> vector<128x128xf32>
    %7 = arith.addf %3, %6 : vector<128x128xf32>
    %c0_6 = arith.constant 0 : index
    %c0_7 = arith.constant 0 : index
    %8 = vector.load %arg7[%c0_6, %c0_7] : memref<128x128xf32, #tpu.memory_space<vmem>>, vector<128x128xf32>
    tpu.vector_store %arg7[%c0_6, %c0_7], %7 {strides = array<i32>} : memref<128x128xf32, #tpu.memory_space<vmem>>, vector<128x128xf32>,
    %c0_i32_8 = arith.constant 0 : i32
    %9 = arith.cmpi eq, %arg2, %c0_i32_8 : i32
    %10 = arith.extui %9 : i1 to i32
    %c0_i32_9 = arith.constant 0 : i32
    %11 = arith.cmpi ne, %10, %c0_i32_9 : i32
    scf.if %11 {
      %c0_10 = arith.constant 0 : index
      %c0_11 = arith.constant 0 : index
      %12 = vector.load %arg7[%c0_10, %c0_11] : memref<128x128xf32, #tpu.memory_space<vmem>>, vector<128x128xf32>
      %c0_12 = arith.constant 0 : index
      %c0_13 = arith.constant 0 : index
      %13 = vector.load %arg5[%c0_12, %c0_13] : memref<8x128xf32, #tpu.memory_space<vmem>>, vector<1x128xf32>
      %14 = vector.broadcast %13 : vector<1x128xf32> to vector<128x128xf32>
      %15 = arith.addf %12, %14 : vector<128x128xf32>
      %c0_14 = arith.constant 0 : index
      %c0_15 = arith.constant 0 : index
      %16 = vector.load %arg6[%c0_14, %c0_15] : memref<128x128xf32, #tpu.memory_space<vmem>>, vector<128x128xf32>
      tpu.vector_store %arg6[%c0_14, %c0_15], %15 {strides = array<i32>} : memref<128x128xf32, #tpu.memory_space<vmem>>, vector<128x128xf32>,
    } else {
    }
    return
  }
  func.func @transform_0(%arg0: i32, %arg1: i32, %arg2: i32) -> (i32, i32) {
    %c0_i32 = arith.constant 0 : i32
    return %arg0, %arg2 : i32, i32
  }
  func.func @transform_1(%arg0: i32, %arg1: i32, %arg2: i32) -> (i32, i32) {
    %c0_i32 = arith.constant 0 : i32
    return %arg2, %arg1 : i32, i32
  }
  func.func @transform_2(%arg0: i32, %arg1: i32, %arg2: i32) -> (i32, i32) {
    %c0_i32 = arith.constant 0 : i32
    %c0_i32_0 = arith.constant 0 : i32
    return %c0_i32, %arg1 : i32, i32
  }
  func.func @transform_3(%arg0: i32, %arg1: i32, %arg2: i32) -> (i32, i32) {
    %c0_i32 = arith.constant 0 : i32
    return %arg0, %arg1 : i32, i32
  }
}

</mosaic_0001>

<llo_original>
// kernel: tpu_custom_call.1
$region0: #{tpu_custom_call.1}
  #allocation0 [shape = 'u32[]', space=smem, size = 0x4, offset = 0x4, fixed_abs, tag = 'smem constant byte address 0x4 - core index']
  #allocation1 [shape = 'u32[144,128]{1,0:T(1,128)}', space=vmem, size = 0x12000, scoped, tag = 'internal scratch']
  #allocation2 [shape = 'f32[128,128]{1,0:T(8,128)}', space=vmem, size = 0x10000, scoped, tag = 'scratch operand']
  %s0 = inlined_call_operand.vmem [shape: f32[128,8], index: 0, kind: input, shape index: {}]
  %s1 = inlined_call_operand.vmem [shape: f32[8,128], index: 1, kind: input, shape index: {}]
  %s2 = inlined_call_operand.vmem [shape: f32[8,128], index: 2, kind: input, shape index: {}]
  %s3 = inlined_call_operand.hbm [shape: f32[128,128], index: 3, kind: output, shape index: {}]
  %s4 = sld [smem:[#allocation0]]
  $region30: #{tpu_custom_call.1} parent=0
    _
  %s6 = ssub.s32 1, %s4
  %s7 = scalar_select 0, %s6, %s4
  $region1: #{tpu_custom_call.1} parent=0
    #allocation3 [shape = 'u8[65536]{0}', space=vmem, size = 0x10000, scoped, tag = 'output window, operand 0, single buffered']
    #allocation4 [shape = 's32[1]{0}', space=sflag, size = 0x4, scoped, tag = 'scoped memory for tpu_custom_call.1']
    %8 = vsyncpa [#allocation4], 0
    // Predicated region
    $region2: #{tpu_custom_call.1} parent=1 // pred_check
      _
    $region3: #{tpu_custom_call.1} parent=1 // pred_check_branch
      %10 = sbr.rel (0) target = $region5
    $region4: #{tpu_custom_call.1} parent=1 // pred_region
      _
    $region5: #{tpu_custom_call.1} parent=1 // pred_fallthru
      _
    // Predicated region
    $region6: #{tpu_custom_call.1} parent=1 // pred_check
      _
    $region7: #{tpu_custom_call.1} parent=1 // pred_check_branch
      %12 = sbr.rel (0) target = $region9
    $region8: #{tpu_custom_call.1} parent=1 // pred_region
      _
    $region9: #{tpu_custom_call.1} parent=1 // pred_fallthru
      _
    // Predicated region
    $region10: #{tpu_custom_call.1} parent=1 // pred_check
      _
    $region11: #{tpu_custom_call.1} parent=1 // pred_check_branch
      %14 = sbr.rel (0) target = $region13
    $region12: #{tpu_custom_call.1} parent=1 // pred_region
      _
    $region13: #{tpu_custom_call.1} parent=1 // pred_fallthru
      _
    %p15 = scmp.eq.s32.totalorder 0, 0
    // Predicated region
    $region14: #{tpu_custom_call.1} parent=1 // pred_check
      %p16 = pneg %p15
    $region15: #{tpu_custom_call.1} parent=1 // pred_check_branch
      %18 = sbr.rel (%p16) target = $region17
    $region16: #{tpu_custom_call.1} parent=1 // pred_region
      %19 = vst [vmem:[#allocation2] sm:$0xff] 0.0
      %20 = vst [vmem:[#allocation2 + $0x8] sm:$0xff] 0.0
      %21 = vst [vmem:[#allocation2 + $0x10] sm:$0xff] 0.0
      %22 = vst [vmem:[#allocation2 + $0x18] sm:$0xff] 0.0
      %23 = vst [vmem:[#allocation2 + $0x20] sm:$0xff] 0.0
      %24 = vst [vmem:[#allocation2 + $0x28] sm:$0xff] 0.0
      %25 = vst [vmem:[#allocation2 + $0x30] sm:$0xff] 0.0
      %26 = vst [vmem:[#allocation2 + $0x38] sm:$0xff] 0.0
      %27 = vst [vmem:[#allocation2 + $0x40] sm:$0xff] 0.0
      %28 = vst [vmem:[#allocation2 + $0x48] sm:$0xff] 0.0
      %29 = vst [vmem:[#allocation2 + $0x50] sm:$0xff] 0.0
      %30 = vst [vmem:[#allocation2 + $0x58] sm:$0xff] 0.0
      %31 = vst [vmem:[#allocation2 + $0x60] sm:$0xff] 0.0
      %32 = vst [vmem:[#allocation2 + $0x68] sm:$0xff] 0.0
      %33 = vst [vmem:[#allocation2 + $0x70] sm:$0xff] 0.0
      %34 = vst [vmem:[#allocation2 + $0x78] sm:$0xff] 0.0
    $region17: #{tpu_custom_call.1} parent=1 // pred_fallthru
      _
    %v35 = vld [vmem:[#allocation2] sm:$0xff]
    %v36 = vld [vmem:[#allocation2 + $0x8] sm:$0xff]
    %v37 = vld [vmem:[#allocation2 + $0x10] sm:$0xff]
    %v38 = vld [vmem:[#allocation2 + $0x18] sm:$0xff]
    %v39 = vld [vmem:[#allocation2 + $0x20] sm:$0xff]
    %v40 = vld [vmem:[#allocation2 + $0x28] sm:$0xff]
    %v41 = vld [vmem:[#allocation2 + $0x30] sm:$0xff]
    %v42 = vld [vmem:[#allocation2 + $0x38] sm:$0xff]
    %v43 = vld [vmem:[#allocation2 + $0x40] sm:$0xff]
    %v44 = vld [vmem:[#allocation2 + $0x48] sm:$0xff]
    %v45 = vld [vmem:[#allocation2 + $0x50] sm:$0xff]
    %v46 = vld [vmem:[#allocation2 + $0x58] sm:$0xff]
    %v47 = vld [vmem:[#allocation2 + $0x60] sm:$0xff]
    %v48 = vld [vmem:[#allocation2 + $0x68] sm:$0xff]
    %v49 = vld [vmem:[#allocation2 + $0x70] sm:$0xff]
    %v50 = vld [vmem:[#allocation2 + $0x78] sm:$0xff]
    %v51 = vld [vmem:[%s0] sm:$0xff]
    %v52 = vld [vmem:[%s0 + $0x8] sm:$0xff]
    %v53 = vld [vmem:[%s0 + $0x10] sm:$0xff]
    %v54 = vld [vmem:[%s0 + $0x18] sm:$0xff]
    %v55 = vld [vmem:[%s0 + $0x20] sm:$0xff]
    %v56 = vld [vmem:[%s0 + $0x28] sm:$0xff]
    %v57 = vld [vmem:[%s0 + $0x30] sm:$0xff]
    %v58 = vld [vmem:[%s0 + $0x38] sm:$0xff]
    %v59 = vld [vmem:[%s0 + $0x40] sm:$0xff]
    %v60 = vld [vmem:[%s0 + $0x48] sm:$0xff]
    %v61 = vld [vmem:[%s0 + $0x50] sm:$0xff]
    %v62 = vld [vmem:[%s0 + $0x58] sm:$0xff]
    %v63 = vld [vmem:[%s0 + $0x60] sm:$0xff]
    %v64 = vld [vmem:[%s0 + $0x68] sm:$0xff]
    %v65 = vld [vmem:[%s0 + $0x70] sm:$0xff]
    %v66 = vld [vmem:[%s0 + $0x78] sm:$0xff]
    %v67 = vld [vmem:[%s1] sm:$0xff]
    %vm68 = vcmask 64512
    %v70 = vsel %vm68, %v51, 0
    %v73 = vsel %vm68, %v52, 0
    %v76 = vsel %vm68, %v53, 0
    %v79 = vsel %vm68, %v54, 0
    %v82 = vsel %vm68, %v55, 0
    %v85 = vsel %vm68, %v56, 0
    %v88 = vsel %vm68, %v57, 0
    %v91 = vsel %vm68, %v58, 0
    %v94 = vsel %vm68, %v59, 0
    %v97 = vsel %vm68, %v60, 0
    %v100 = vsel %vm68, %v61, 0
    %v103 = vsel %vm68, %v62, 0
    %v106 = vsel %vm68, %v63, 0
    %v109 = vsel %vm68, %v64, 0
    %v112 = vsel %vm68, %v65, 0
    %v115 = vsel %vm68, %v66, 0
    %117 = vmatprep.subr.mxu0 0.0
    %118 = vmatpush1.msra.mxu0 0.0
    %119 = vmatprep.subr.mxu0 0.0
    %120 = vmatpush1.msra.mxu0 0.0
    %121 = vmatprep.subr.mxu0 0.0
    %122 = vmatpush1.msra.mxu0 0.0
    %123 = vmatprep.subr.mxu0 0.0
    %124 = vmatpush1.msra.mxu0 0.0
    %125 = vmatprep.subr.mxu0 0.0
    %126 = vmatpush1.msra.mxu0 0.0
    %127 = vmatprep.subr.mxu0 0.0
    %128 = vmatpush1.msra.mxu0 0.0
    %129 = vmatprep.subr.mxu0 0.0
    %130 = vmatpush1.msra.mxu0 0.0
    %131 = vmatprep.subr.mxu0 0.0
    %132 = vmatpush1.msra.mxu0 0.0
    %133 = vmatprep.subr.mxu0 0.0
    %134 = vmatpush1.msra.mxu0 0.0
    %135 = vmatprep.subr.mxu0 0.0
    %136 = vmatpush1.msra.mxu0 0.0
    %137 = vmatprep.subr.mxu0 0.0
    %138 = vmatpush1.msra.mxu0 0.0
    %139 = vmatprep.subr.mxu0 0.0
    %140 = vmatpush1.msra.mxu0 0.0
    %141 = vmatprep.subr.mxu0 0.0
    %142 = vmatpush1.msra.mxu0 0.0
    %143 = vmatprep.subr.mxu0 0.0
    %144 = vmatpush1.msra.mxu0 0.0
    %145 = vmatprep.subr.mxu0 0.0
    %146 = vmatpush1.msra.mxu0 0.0
    %147 = vmatprep.subr.mxu0 0.0
    %148 = vmatpush1.msra.mxu0 %v67
    %149 = vmatprep.subr.mxu0 0.0
    %150 = vmatpush2.msra.mxu0 0.0
    %151 = vmatprep.subr.mxu0 0.0
    %152 = vmatpush2.msra.mxu0 0.0
    %153 = vmatprep.subr.mxu0 0.0
    %154 = vmatpush2.msra.mxu0 0.0
    %155 = vmatprep.subr.mxu0 0.0
    %156 = vmatpush2.msra.mxu0 0.0
    %157 = vmatprep.subr.mxu0 0.0
    %158 = vmatpush2.msra.mxu0 0.0
    %159 = vmatprep.subr.mxu0 0.0
    %160 = vmatpush2.msra.mxu0 0.0
    %161 = vmatprep.subr.mxu0 0.0
    %162 = vmatpush2.msra.mxu0 0.0
    %163 = vmatprep.subr.mxu0 0.0
    %164 = vmatpush2.msra.mxu0 0.0
    %165 = vmatprep.subr.mxu0 0.0
    %166 = vmatpush2.msra.mxu0 0.0
    %167 = vmatprep.subr.mxu0 0.0
    %168 = vmatpush2.msra.mxu0 0.0
    %169 = vmatprep.subr.mxu0 0.0
    %170 = vmatpush2.msra.mxu0 0.0
    %171 = vmatprep.subr.mxu0 0.0
    %172 = vmatpush2.msra.mxu0 0.0
    %173 = vmatprep.subr.mxu0 0.0
    %174 = vmatpush2.msra.mxu0 0.0
    %175 = vmatprep.subr.mxu0 0.0
    %176 = vmatpush2.msra.mxu0 0.0
    %177 = vmatprep.subr.mxu0 0.0
    %178 = vmatpush2.msra.mxu0 0.0
    %179 = vmatprep.subr.mxu0 0.0
    %180 = vmatpush2.msra.mxu0 0.0
    %181 = vmatprep.mubr.f32.mxu0 0.0
    %182 = vmatmul.mubr.f32.gmra.mxu0 %v70
    %v183 = vpop.f32.mrf.mxu0
    %v184 = vadd.f32 0.0, %v183
    %v185 = vpop.f32.mrf.mxu0
    %186 = vmatprep.mubr.f32.mxu0 0.0
    %187 = vmatmul.mubr.f32.gmra.mxu0 %v73
    %v188 = vpop.f32.mrf.mxu0
    %v189 = vadd.f32 0.0, %v188
    %v190 = vpop.f32.mrf.mxu0
    %191 = vmatprep.mubr.f32.mxu0 0.0
    %192 = vmatmul.mubr.f32.gmra.mxu0 %v76
    %v193 = vpop.f32.mrf.mxu0
    %v194 = vadd.f32 0.0, %v193
    %v195 = vpop.f32.mrf.mxu0
    %196 = vmatprep.mubr.f32.mxu0 0.0
    %197 = vmatmul.mubr.f32.gmra.mxu0 %v79
    %v198 = vpop.f32.mrf.mxu0
    %v199 = vadd.f32 0.0, %v198
    %v200 = vpop.f32.mrf.mxu0
    %201 = vmatprep.mubr.f32.mxu0 0.0
    %202 = vmatmul.mubr.f32.gmra.mxu0 %v82
    %v203 = vpop.f32.mrf.mxu0
    %v204 = vadd.f32 0.0, %v203
    %v205 = vpop.f32.mrf.mxu0
    %206 = vmatprep.mubr.f32.mxu0 0.0
    %207 = vmatmul.mubr.f32.gmra.mxu0 %v85
    %v208 = vpop.f32.mrf.mxu0
    %v209 = vadd.f32 0.0, %v208
    %v210 = vpop.f32.mrf.mxu0
    %211 = vmatprep.mubr.f32.mxu0 0.0
    %212 = vmatmul.mubr.f32.gmra.mxu0 %v88
    %v213 = vpop.f32.mrf.mxu0
    %v214 = vadd.f32 0.0, %v213
    %v215 = vpop.f32.mrf.mxu0
    %216 = vmatprep.mubr.f32.mxu0 0.0
    %217 = vmatmul.mubr.f32.gmra.mxu0 %v91
    %v218 = vpop.f32.mrf.mxu0
    %v219 = vadd.f32 0.0, %v218
    %v220 = vpop.f32.mrf.mxu0
    %221 = vmatprep.mubr.f32.mxu0 0.0
    %222 = vmatmul.mubr.f32.gmra.mxu0 %v94
    %v223 = vpop.f32.mrf.mxu0
    %v224 = vadd.f32 0.0, %v223
    %v225 = vpop.f32.mrf.mxu0
    %226 = vmatprep.mubr.f32.mxu0 0.0
    %227 = vmatmul.mubr.f32.gmra.mxu0 %v97
    %v228 = vpop.f32.mrf.mxu0
    %v229 = vadd.f32 0.0, %v228
    %v230 = vpop.f32.mrf.mxu0
    %231 = vmatprep.mubr.f32.mxu0 0.0
    %232 = vmatmul.mubr.f32.gmra.mxu0 %v100
    %v233 = vpop.f32.mrf.mxu0
    %v234 = vadd.f32 0.0, %v233
    %v235 = vpop.f32.mrf.mxu0
    %236 = vmatprep.mubr.f32.mxu0 0.0
    %237 = vmatmul.mubr.f32.gmra.mxu0 %v103
    %v238 = vpop.f32.mrf.mxu0
    %v239 = vadd.f32 0.0, %v238
    %v240 = vpop.f32.mrf.mxu0
    %241 = vmatprep.mubr.f32.mxu0 0.0
    %242 = vmatmul.mubr.f32.gmra.mxu0 %v106
    %v243 = vpop.f32.mrf.mxu0
    %v244 = vadd.f32 0.0, %v243
    %v245 = vpop.f32.mrf.mxu0
    %246 = vmatprep.mubr.f32.mxu0 0.0
    %247 = vmatmul.mubr.f32.gmra.mxu0 %v109
    %v248 = vpop.f32.mrf.mxu0
    %v249 = vadd.f32 0.0, %v248
    %v250 = vpop.f32.mrf.mxu0
    %251 = vmatprep.mubr.f32.mxu0 0.0
    %252 = vmatmul.mubr.f32.gmra.mxu0 %v112
    %v253 = vpop.f32.mrf.mxu0
    %v254 = vadd.f32 0.0, %v253
    %v255 = vpop.f32.mrf.mxu0
    %256 = vmatprep.mubr.f32.mxu0 0.0
    %257 = vmatmul.mubr.f32.gmra.mxu0 %v115
    %v258 = vpop.f32.mrf.mxu0
    %v259 = vadd.f32 0.0, %v258
    %v260 = vpop.f32.mrf.mxu0
    %261 = vdwg.mxu0
    %v262 = vadd.f32 %v35, %v184
    %v263 = vadd.f32 %v36, %v189
    %v264 = vadd.f32 %v37, %v194
    %v265 = vadd.f32 %v38, %v199
    %v266 = vadd.f32 %v39, %v204
    %v267 = vadd.f32 %v40, %v209
    %v268 = vadd.f32 %v41, %v214
    %v269 = vadd.f32 %v42, %v219
    %v270 = vadd.f32 %v43, %v224
    %v271 = vadd.f32 %v44, %v229
    %v272 = vadd.f32 %v45, %v234
    %v273 = vadd.f32 %v46, %v239
    %v274 = vadd.f32 %v47, %v244
    %v275 = vadd.f32 %v48, %v249
    %v276 = vadd.f32 %v49, %v254
    %v277 = vadd.f32 %v50, %v259
    %278 = vst [vmem:[#allocation2] sm:$0xff] %v262
    %279 = vst [vmem:[#allocation2 + $0x8] sm:$0xff] %v263
    %280 = vst [vmem:[#allocation2 + $0x10] sm:$0xff] %v264
    %281 = vst [vmem:[#allocation2 + $0x18] sm:$0xff] %v265
    %282 = vst [vmem:[#allocation2 + $0x20] sm:$0xff] %v266
    %283 = vst [vmem:[#allocation2 + $0x28] sm:$0xff] %v267
    %284 = vst [vmem:[#allocation2 + $0x30] sm:$0xff] %v268
    %285 = vst [vmem:[#allocation2 + $0x38] sm:$0xff] %v269
    %286 = vst [vmem:[#allocation2 + $0x40] sm:$0xff] %v270
    %287 = vst [vmem:[#allocation2 + $0x48] sm:$0xff] %v271
    %288 = vst [vmem:[#allocation2 + $0x50] sm:$0xff] %v272
    %289 = vst [vmem:[#allocation2 + $0x58] sm:$0xff] %v273
    %290 = vst [vmem:[#allocation2 + $0x60] sm:$0xff] %v274
    %291 = vst [vmem:[#allocation2 + $0x68] sm:$0xff] %v275
    %292 = vst [vmem:[#allocation2 + $0x70] sm:$0xff] %v276
    %293 = vst [vmem:[#allocation2 + $0x78] sm:$0xff] %v277
    // Predicated region
    $region18: #{tpu_custom_call.1} parent=1 // pred_check
      %p294 = pneg %p15
    $region19: #{tpu_custom_call.1} parent=1 // pred_check_branch
      %296 = sbr.rel (%p294) target = $region21
    $region20: #{tpu_custom_call.1} parent=1 // pred_region
      %v297 = vld [vmem:[#allocation2] sm:$0xff]
      %v298 = vld [vmem:[#allocation2 + $0x8] sm:$0xff]
      %v299 = vld [vmem:[#allocation2 + $0x10] sm:$0xff]
      %v300 = vld [vmem:[#allocation2 + $0x18] sm:$0xff]
      %v301 = vld [vmem:[#allocation2 + $0x20] sm:$0xff]
      %v302 = vld [vmem:[#allocation2 + $0x28] sm:$0xff]
      %v303 = vld [vmem:[#allocation2 + $0x30] sm:$0xff]
      %v304 = vld [vmem:[#allocation2 + $0x38] sm:$0xff]
      %v305 = vld [vmem:[#allocation2 + $0x40] sm:$0xff]
      %v306 = vld [vmem:[#allocation2 + $0x48] sm:$0xff]
      %v307 = vld [vmem:[#allocation2 + $0x50] sm:$0xff]
      %v308 = vld [vmem:[#allocation2 + $0x58] sm:$0xff]
      %v309 = vld [vmem:[#allocation2 + $0x60] sm:$0xff]
      %v310 = vld [vmem:[#allocation2 + $0x68] sm:$0xff]
      %v311 = vld [vmem:[#allocation2 + $0x70] sm:$0xff]
      %v312 = vld [vmem:[#allocation2 + $0x78] sm:$0xff]
      %v313 = vld [vmem:[%s2] sm:$0x1]
      %v314 = vlaneseq
      %v315 = vshrl.u32 %v314, 7
      %v316 = vsub.s32 0, %v315
      %v317 = vrot.slane %v313, %v316
      %v318 = vadd.f32 %v297, %v317
      %v319 = vadd.f32 %v298, %v317
      %v320 = vadd.f32 %v299, %v317
      %v321 = vadd.f32 %v300, %v317
      %v322 = vadd.f32 %v301, %v317
      %v323 = vadd.f32 %v302, %v317
      %v324 = vadd.f32 %v303, %v317
      %v325 = vadd.f32 %v304, %v317
      %v326 = vadd.f32 %v305, %v317
      %v327 = vadd.f32 %v306, %v317
      %v328 = vadd.f32 %v307, %v317
      %v329 = vadd.f32 %v308, %v317
      %v330 = vadd.f32 %v309, %v317
      %v331 = vadd.f32 %v310, %v317
      %v332 = vadd.f32 %v311, %v317
      %v333 = vadd.f32 %v312, %v317
      %334 = vst [vmem:[#allocation3] sm:$0xff] %v318
      %335 = vst [vmem:[#allocation3 + $0x8] sm:$0xff] %v319
      %336 = vst [vmem:[#allocation3 + $0x10] sm:$0xff] %v320
      %337 = vst [vmem:[#allocation3 + $0x18] sm:$0xff] %v321
      %338 = vst [vmem:[#allocation3 + $0x20] sm:$0xff] %v322
      %339 = vst [vmem:[#allocation3 + $0x28] sm:$0xff] %v323
      %340 = vst [vmem:[#allocation3 + $0x30] sm:$0xff] %v324
      %341 = vst [vmem:[#allocation3 + $0x38] sm:$0xff] %v325
      %342 = vst [vmem:[#allocation3 + $0x40] sm:$0xff] %v326
      %343 = vst [vmem:[#allocation3 + $0x48] sm:$0xff] %v327
      %344 = vst [vmem:[#allocation3 + $0x50] sm:$0xff] %v328
      %345 = vst [vmem:[#allocation3 + $0x58] sm:$0xff] %v329
      %346 = vst [vmem:[#allocation3 + $0x60] sm:$0xff] %v330
      %347 = vst [vmem:[#allocation3 + $0x68] sm:$0xff] %v331
      %348 = vst [vmem:[#allocation3 + $0x70] sm:$0xff] %v332
      %349 = vst [vmem:[#allocation3 + $0x78] sm:$0xff] %v333
    $region21: #{tpu_custom_call.1} parent=1 // pred_fallthru
      _
    // Predicated region
    $region22: #{tpu_custom_call.1} parent=1 // pred_check
      _
    $region23: #{tpu_custom_call.1} parent=1 // pred_check_branch
      %351 = sbr.rel (0) target = $region25
    $region24: #{tpu_custom_call.1} parent=1 // pred_region
      %s353 = ssub.s32 2048, 2048
      %354 = vsyncadd [#allocation4], %s353
      %s355 = sshll.u32 [#allocation3], 4
      %s356 = int_to_ptr.vmem [resolvable:$true] %s355
      %361 = dma.vmem_to_hbm [thread:$0]  %s356, 2048, %s3, [#allocation4], 128, 128, 8
    $region25: #{tpu_custom_call.1} parent=1 // pred_fallthru
      _
    // Predicated region
    $region26: #{tpu_custom_call.1} parent=1 // pred_check
      _
    $region27: #{tpu_custom_call.1} parent=1 // pred_check_branch
      %363 = sbr.rel (0) target = $region29
    $region28: #{tpu_custom_call.1} parent=1 // pred_region
      %364 = dma.done [#allocation4], 2048
    $region29: #{tpu_custom_call.1} parent=1 // pred_fallthru
      _
    %365 = vsyncpa [#allocation4], 1

</llo_original>
